<compile_context>
chip_gen: v7x
topology: tpu7x:2x2x1
jax: 0.10.0
libtpu: 0.0.40
codegen_flags: <defaults>
</compile_context>

<pallas_src>
import jax
import jax.numpy as jnp
from jax.experimental import pallas as pl
from jax.experimental.pallas import tpu as pltpu

NEG_SLOPE = 0.1


def _init_fea_kernel(x_ref, w_ref, o_ref):
    # x_ref: (TB, HW)    -- TB flattened single-channel input images
    # w_ref: (C,)        -- 1x1 conv weights, resident in SMEM (scalars)
    # o_ref: (TB, C*HW)  -- lane-dense output slab (== contiguous NCHW)
    x = x_ref[...]                         # (TB, HW)
    hw = x.shape[1]
    num_ch = o_ref.shape[1] // hw
    for c in range(num_ch):                # static unrolled loop over out channels (C is small)
        y = x * w_ref[c]                   # SMEM scalar * vreg broadcast on the VPU
        y = jnp.maximum(y, NEG_SLOPE * y)  # LeakyReLU(0.1): one mul + one max
        o_ref[:, c * hw:(c + 1) * hw] = y.astype(o_ref.dtype)


def _pick_block_rows(bn, hw, num_ch, itemsize, vmem_budget_bytes):
    """Rows per grid step.

    Sized so the double-buffered (input tile + output tile) working set stays within
    `vmem_budget_bytes`, keeping headroom under the default scoped-VMEM limit on every chip,
    while making each step as large as possible (amortizes per-step pipeline overhead and
    keeps stores lane-dense). The second-to-last block dim must be a multiple of 8 unless it
    equals the full array extent.
    """
    per_row_bytes = (num_ch + 1) * hw * itemsize          # 1 input row + C output rows
    tb = max(1, vmem_budget_bytes // (2 * per_row_bytes))  # x2: BlockSpec double-buffers
    if tb >= bn:
        return bn                          # single full-extent block is always legal
    tb = max(8, (tb // 8) * 8)             # sublane (8) alignment for the row dim
    return min(tb, bn)


def init_fea_extract(x, weight, *, vmem_budget_bytes=12 << 20):
    """x: (b, n, 1, h, w), weight: (C,)  ->  (b, n, C, h, w)."""
    b, n, r, h, w = x.shape
    assert r == 1, "Conv2d(1, channel, 1) requires a single input channel (r == 1)"
    num_ch = weight.shape[0]
    bn, hw = b * n, h * w

    xr = x.reshape(bn, hw)                 # contiguous flatten of (b*n, 1, h, w) -- free
    tb = _pick_block_rows(bn, hw, num_ch, jnp.dtype(x.dtype).itemsize, vmem_budget_bytes)
    grid = (pl.cdiv(bn, tb),)

    out = pl.pallas_call(
        _init_fea_kernel,
        out_shape=jax.ShapeDtypeStruct((bn, num_ch * hw), x.dtype),
        grid=grid,
        in_specs=[
            pl.BlockSpec((tb, hw), lambda i: (i, 0)),
            pl.BlockSpec(memory_space=pltpu.MemorySpace.SMEM),  # whole (C,) weight in SMEM
        ],
        out_specs=pl.BlockSpec((tb, num_ch * hw), lambda i: (i, 0)),
        compiler_params=pltpu.CompilerParams(
            dimension_semantics=("parallel",)),  # row-block axis shards across v7x's 2 TCs
    )(xr, weight)

    # (bn, C*hw) is exactly NCHW-contiguous -> this reshape is free (no transpose).
    return out.reshape(b, n, num_ch, h, w)


def _reference(x, weight):
    # pure-JAX reference mirroring the PyTorch forward
    b, n, r, h, w = x.shape
    y = x.reshape(b * n, r, h, w)[:, 0]                   # (b*n, h, w)
    y = weight[None, :, None, None] * y[:, None, :, :]    # (b*n, C, h, w)
    y = jnp.where(y >= 0, y, NEG_SLOPE * y)
    return y.reshape(b, n, weight.shape[0], h, w)


if __name__ == "__main__":
    key = jax.random.PRNGKey(0)
    kx, kw = jax.random.split(key)

    b, n, r, h, w = 2, 4, 1, 16, 16
    channel = 8

    x = jax.random.normal(kx, (b, n, r, h, w), dtype=jnp.float32)
    # Deterministic weight init (matches Conv2d kaiming-uniform bound for fan_in=1: U(-1, 1))
    weight = jax.random.uniform(kw, (channel,), dtype=jnp.float32,
                                minval=-1.0, maxval=1.0)

    out = init_fea_extract(x, weight)
    out = jax.block_until_ready(out)

    ref = _reference(x, weight)
    assert out.shape == (b, n, channel, h, w)
    assert jnp.allclose(out, ref, atol=1e-6, rtol=1e-6)
    print("KERNEL_OK")
</pallas_src>

<mosaic_0001>
module attributes {stable_mosaic.version = 11 : i64} {
  func.func @_init_fea_kernel(%arg0: i32, %arg1: memref<8x256xf32, #tpu.memory_space<vmem>>, %arg2: memref<8xf32, #tpu.memory_space<smem>>, %arg3: memref<8x2048xf32, #tpu.memory_space<vmem>>) attributes {dimension_semantics = [#tpu.dimension_semantics<parallel>], iteration_bounds = array<i64: 1>, scalar_prefetch = 0 : i64, scratch_operands = 0 : i64, tpu.core_type = #tpu.core_type<tc>, window_params = [{transform_indices = @transform_0, window_bounds = array<i64: 8, 256>}, {transform_indices = @transform_1, window_bounds = array<i64: 8>}, {transform_indices = @transform_2, window_bounds = array<i64: 8, 2048>}]} {
    %c0 = arith.constant 0 : index
    %c0_0 = arith.constant 0 : index
    %0 = vector.load %arg1[%c0, %c0_0] : memref<8x256xf32, #tpu.memory_space<vmem>>, vector<8x256xf32>
    %c0_1 = arith.constant 0 : index
    %1 = memref.load %arg2[%c0_1] : memref<8xf32, #tpu.memory_space<smem>>
    %2 = vector.broadcast %1 : f32 to vector<8x256xf32>
    %3 = arith.mulf %0, %2 : vector<8x256xf32>
    %cst = arith.constant 1.000000e-01 : f32
    %4 = vector.broadcast %cst : f32 to vector<8x256xf32>
    %5 = arith.mulf %4, %3 : vector<8x256xf32>
    %6 = arith.maximumf %3, %5 : vector<8x256xf32>
    %c0_2 = arith.constant 0 : index
    %c0_3 = arith.constant 0 : index
    %7 = vector.load %arg3[%c0_2, %c0_3] : memref<8x2048xf32, #tpu.memory_space<vmem>>, vector<8x256xf32>
    tpu.vector_store %arg3[%c0_2, %c0_3], %6 {strides = array<i32>} : memref<8x2048xf32, #tpu.memory_space<vmem>>, vector<8x256xf32>,
    %c1 = arith.constant 1 : index
    %8 = memref.load %arg2[%c1] : memref<8xf32, #tpu.memory_space<smem>>
    %9 = vector.broadcast %8 : f32 to vector<8x256xf32>
    %10 = arith.mulf %0, %9 : vector<8x256xf32>
    %cst_4 = arith.constant 1.000000e-01 : f32
    %11 = vector.broadcast %cst_4 : f32 to vector<8x256xf32>
    %12 = arith.mulf %11, %10 : vector<8x256xf32>
    %13 = arith.maximumf %10, %12 : vector<8x256xf32>
    %c0_5 = arith.constant 0 : index
    %c256 = arith.constant 256 : index
    %14 = vector.load %arg3[%c0_5, %c256] : memref<8x2048xf32, #tpu.memory_space<vmem>>, vector<8x256xf32>
    tpu.vector_store %arg3[%c0_5, %c256], %13 {strides = array<i32>} : memref<8x2048xf32, #tpu.memory_space<vmem>>, vector<8x256xf32>,
    %c2 = arith.constant 2 : index
    %15 = memref.load %arg2[%c2] : memref<8xf32, #tpu.memory_space<smem>>
    %16 = vector.broadcast %15 : f32 to vector<8x256xf32>
    %17 = arith.mulf %0, %16 : vector<8x256xf32>
    %cst_6 = arith.constant 1.000000e-01 : f32
    %18 = vector.broadcast %cst_6 : f32 to vector<8x256xf32>
    %19 = arith.mulf %18, %17 : vector<8x256xf32>
    %20 = arith.maximumf %17, %19 : vector<8x256xf32>
    %c0_7 = arith.constant 0 : index
    %c512 = arith.constant 512 : index
    %21 = vector.load %arg3[%c0_7, %c512] : memref<8x2048xf32, #tpu.memory_space<vmem>>, vector<8x256xf32>
    tpu.vector_store %arg3[%c0_7, %c512], %20 {strides = array<i32>} : memref<8x2048xf32, #tpu.memory_space<vmem>>, vector<8x256xf32>,
    %c3 = arith.constant 3 : index
    %22 = memref.load %arg2[%c3] : memref<8xf32, #tpu.memory_space<smem>>
    %23 = vector.broadcast %22 : f32 to vector<8x256xf32>
    %24 = arith.mulf %0, %23 : vector<8x256xf32>
    %cst_8 = arith.constant 1.000000e-01 : f32
    %25 = vector.broadcast %cst_8 : f32 to vector<8x256xf32>
    %26 = arith.mulf %25, %24 : vector<8x256xf32>
    %27 = arith.maximumf %24, %26 : vector<8x256xf32>
    %c0_9 = arith.constant 0 : index
    %c768 = arith.constant 768 : index
    %28 = vector.load %arg3[%c0_9, %c768] : memref<8x2048xf32, #tpu.memory_space<vmem>>, vector<8x256xf32>
    tpu.vector_store %arg3[%c0_9, %c768], %27 {strides = array<i32>} : memref<8x2048xf32, #tpu.memory_space<vmem>>, vector<8x256xf32>,
    %c4 = arith.constant 4 : index
    %29 = memref.load %arg2[%c4] : memref<8xf32, #tpu.memory_space<smem>>
    %30 = vector.broadcast %29 : f32 to vector<8x256xf32>
    %31 = arith.mulf %0, %30 : vector<8x256xf32>
    %cst_10 = arith.constant 1.000000e-01 : f32
    %32 = vector.broadcast %cst_10 : f32 to vector<8x256xf32>
    %33 = arith.mulf %32, %31 : vector<8x256xf32>
    %34 = arith.maximumf %31, %33 : vector<8x256xf32>
    %c0_11 = arith.constant 0 : index
    %c1024 = arith.constant 1024 : index
    %35 = vector.load %arg3[%c0_11, %c1024] : memref<8x2048xf32, #tpu.memory_space<vmem>>, vector<8x256xf32>
    tpu.vector_store %arg3[%c0_11, %c1024], %34 {strides = array<i32>} : memref<8x2048xf32, #tpu.memory_space<vmem>>, vector<8x256xf32>,
    %c5 = arith.constant 5 : index
    %36 = memref.load %arg2[%c5] : memref<8xf32, #tpu.memory_space<smem>>
    %37 = vector.broadcast %36 : f32 to vector<8x256xf32>
    %38 = arith.mulf %0, %37 : vector<8x256xf32>
    %cst_12 = arith.constant 1.000000e-01 : f32
    %39 = vector.broadcast %cst_12 : f32 to vector<8x256xf32>
    %40 = arith.mulf %39, %38 : vector<8x256xf32>
    %41 = arith.maximumf %38, %40 : vector<8x256xf32>
    %c0_13 = arith.constant 0 : index
    %c1280 = arith.constant 1280 : index
    %42 = vector.load %arg3[%c0_13, %c1280] : memref<8x2048xf32, #tpu.memory_space<vmem>>, vector<8x256xf32>
    tpu.vector_store %arg3[%c0_13, %c1280], %41 {strides = array<i32>} : memref<8x2048xf32, #tpu.memory_space<vmem>>, vector<8x256xf32>,
    %c6 = arith.constant 6 : index
    %43 = memref.load %arg2[%c6] : memref<8xf32, #tpu.memory_space<smem>>
    %44 = vector.broadcast %43 : f32 to vector<8x256xf32>
    %45 = arith.mulf %0, %44 : vector<8x256xf32>
    %cst_14 = arith.constant 1.000000e-01 : f32
    %46 = vector.broadcast %cst_14 : f32 to vector<8x256xf32>
    %47 = arith.mulf %46, %45 : vector<8x256xf32>
    %48 = arith.maximumf %45, %47 : vector<8x256xf32>
    %c0_15 = arith.constant 0 : index
    %c1536 = arith.constant 1536 : index
    %49 = vector.load %arg3[%c0_15, %c1536] : memref<8x2048xf32, #tpu.memory_space<vmem>>, vector<8x256xf32>
    tpu.vector_store %arg3[%c0_15, %c1536], %48 {strides = array<i32>} : memref<8x2048xf32, #tpu.memory_space<vmem>>, vector<8x256xf32>,
    %c7 = arith.constant 7 : index
    %50 = memref.load %arg2[%c7] : memref<8xf32, #tpu.memory_space<smem>>
    %51 = vector.broadcast %50 : f32 to vector<8x256xf32>
    %52 = arith.mulf %0, %51 : vector<8x256xf32>
    %cst_16 = arith.constant 1.000000e-01 : f32
    %53 = vector.broadcast %cst_16 : f32 to vector<8x256xf32>
    %54 = arith.mulf %53, %52 : vector<8x256xf32>
    %55 = arith.maximumf %52, %54 : vector<8x256xf32>
    %c0_17 = arith.constant 0 : index
    %c1792 = arith.constant 1792 : index
    %56 = vector.load %arg3[%c0_17, %c1792] : memref<8x2048xf32, #tpu.memory_space<vmem>>, vector<8x256xf32>
    tpu.vector_store %arg3[%c0_17, %c1792], %55 {strides = array<i32>} : memref<8x2048xf32, #tpu.memory_space<vmem>>, vector<8x256xf32>,
    return
  }
  func.func @transform_0(%arg0: i32) -> (i32, i32) {
    %c0_i32 = arith.constant 0 : i32
    %c0_i32_0 = arith.constant 0 : i32
    return %arg0, %c0_i32 : i32, i32
  }
  func.func @transform_1(%arg0: i32) -> i32 {
    %c0_i32 = arith.constant 0 : i32
    %c0_i32_0 = arith.constant 0 : i32
    return %c0_i32 : i32
  }
  func.func @transform_2(%arg0: i32) -> (i32, i32) {
    %c0_i32 = arith.constant 0 : i32
    %c0_i32_0 = arith.constant 0 : i32
    return %arg0, %c0_i32 : i32, i32
  }
}

</mosaic_0001>

<llo_original>
// kernel: tpu_custom_call.1
$region0: #{tpu_custom_call.1}
  #allocation0 [shape = 'u32[]', space=smem, size = 0x4, offset = 0x4, fixed_abs, tag = 'smem constant byte address 0x4 - core index']
  #allocation1 [shape = 'u32[144,128]{1,0:T(1,128)}', space=vmem, size = 0x12000, scoped, tag = 'internal scratch']
  %s0 = inlined_call_operand.hbm [shape: f32[8,256], index: 0, kind: input, shape index: {}]
  %s1 = inlined_call_operand.vmem [shape: f32[8], index: 1, kind: input, shape index: {}]
  %s2 = inlined_call_operand.hbm [shape: f32[8,2048], index: 2, kind: output, shape index: {}]
  %s3 = sld [smem:[#allocation0]]
  $region26: #{tpu_custom_call.1} parent=0
    _
  %s5 = ssub.s32 1, %s3
  %s6 = scalar_select 0, %s5, %s3
  $region1: #{tpu_custom_call.1} parent=0
    #allocation2 [shape = 'u8[8192]{0}', space=vmem, size = 0x2000, scoped, tag = 'input window, operand 0, single buffered']
    #allocation3 [shape = 's32[1]{0}', space=sflag, size = 0x4, scoped, tag = 'scoped memory for tpu_custom_call.1']
    #allocation4 [shape = 's32[1]{0}', space=sflag, size = 0x4, scoped, tag = 'scoped memory for tpu_custom_call.1']
    #allocation5 [shape = 's32[1]{0}', space=sflag, size = 0x4, scoped, tag = 'scoped memory for tpu_custom_call.1']
    #allocation6 [shape = 'u8[512]{0}', space=smem, size = 0x200, scoped, tag = 'input window, operand 1, single buffered']
    #allocation7 [shape = 'u8[65536]{0}', space=vmem, size = 0x10000, scoped, tag = 'output window, operand 0, single buffered']
    %7 = vsyncpa [#allocation3], 0
    %8 = vsyncpa [#allocation5], 0
    %9 = vsyncpa [#allocation4], 0
    // Predicated region
    $region2: #{tpu_custom_call.1} parent=1 // pred_check
      _
    $region3: #{tpu_custom_call.1} parent=1 // pred_check_branch
      %11 = sbr.rel (0) target = $region5
    $region4: #{tpu_custom_call.1} parent=1 // pred_region
      %s13 = ssub.s32 256, 256
      %14 = vsyncadd [#allocation3], %s13
      %s16 = sshll.u32 [#allocation2], 4
      %s17 = int_to_ptr.vmem [resolvable:$true] %s16
      %19 = dma.hbm_to_vmem [thread:$0]  %s0, 256, %s17, [#allocation3]
    $region5: #{tpu_custom_call.1} parent=1 // pred_fallthru
      _
    // Predicated region
    $region6: #{tpu_custom_call.1} parent=1 // pred_check
      _
    $region7: #{tpu_custom_call.1} parent=1 // pred_check_branch
      %21 = sbr.rel (0) target = $region9
    $region8: #{tpu_custom_call.1} parent=1 // pred_region
      %s23 = ssub.s32 16, 16
      %24 = vsyncadd [#allocation5], %s23
      %s26 = sshll.u32 %s1, 4
      %s27 = int_to_ptr.vmem [resolvable:$true] %s26
      %29 = dma.vmem_to_smem %s27, 16, [#allocation6], [#allocation5]
    $region9: #{tpu_custom_call.1} parent=1 // pred_fallthru
      _
    // Predicated region
    $region10: #{tpu_custom_call.1} parent=1 // pred_check
      _
    $region11: #{tpu_custom_call.1} parent=1 // pred_check_branch
      %31 = sbr.rel (0) target = $region13
    $region12: #{tpu_custom_call.1} parent=1 // pred_region
      %32 = dma.done [#allocation3], 256
    $region13: #{tpu_custom_call.1} parent=1 // pred_fallthru
      _
    // Predicated region
    $region14: #{tpu_custom_call.1} parent=1 // pred_check
      _
    $region15: #{tpu_custom_call.1} parent=1 // pred_check_branch
      %34 = sbr.rel (0) target = $region17
    $region16: #{tpu_custom_call.1} parent=1 // pred_region
      %35 = dma.done [#allocation5], 16
    $region17: #{tpu_custom_call.1} parent=1 // pred_fallthru
      _
    %36 = sfence
    %v37 = vld [vmem:[#allocation2] sm:$0xff]
    %v38 = vld [vmem:[#allocation2 + $0x8] sm:$0xff]
    %s39 = sld [smem:[#allocation6]]
    %v40 = vstv %s39
    %v41 = vmul.f32 %v37, %v40
    %v42 = vmul.f32 %v38, %v40
    %v43 = vmul.f32 %v41, 0.1
    %v44 = vmul.f32 %v42, 0.1
    %v45 = vmax.f32 %v41, %v43
    %v46 = vmax.f32 %v42, %v44
    %47 = vst [vmem:[#allocation7] sm:$0xff] %v45
    %48 = vst [vmem:[#allocation7 + $0x8] sm:$0xff] %v46
    %s49 = sld [smem:[#allocation6 + $0x1]]
    %v50 = vstv %s49
    %v51 = vmul.f32 %v37, %v50
    %v52 = vmul.f32 %v38, %v50
    %v53 = vmul.f32 %v51, 0.1
    %v54 = vmul.f32 %v52, 0.1
    %v55 = vmax.f32 %v51, %v53
    %v56 = vmax.f32 %v52, %v54
    %57 = vst [vmem:[#allocation7 + $0x10] sm:$0xff] %v55
    %58 = vst [vmem:[#allocation7 + $0x18] sm:$0xff] %v56
    %s59 = sld [smem:[#allocation6 + $0x2]]
    %v60 = vstv %s59
    %v61 = vmul.f32 %v37, %v60
    %v62 = vmul.f32 %v38, %v60
    %v63 = vmul.f32 %v61, 0.1
    %v64 = vmul.f32 %v62, 0.1
    %v65 = vmax.f32 %v61, %v63
    %v66 = vmax.f32 %v62, %v64
    %67 = vst [vmem:[#allocation7 + $0x20] sm:$0xff] %v65
    %68 = vst [vmem:[#allocation7 + $0x28] sm:$0xff] %v66
    %s69 = sld [smem:[#allocation6 + $0x3]]
    %v70 = vstv %s69
    %v71 = vmul.f32 %v37, %v70
    %v72 = vmul.f32 %v38, %v70
    %v73 = vmul.f32 %v71, 0.1
    %v74 = vmul.f32 %v72, 0.1
    %v75 = vmax.f32 %v71, %v73
    %v76 = vmax.f32 %v72, %v74
    %77 = vst [vmem:[#allocation7 + $0x30] sm:$0xff] %v75
    %78 = vst [vmem:[#allocation7 + $0x38] sm:$0xff] %v76
    %s79 = sld [smem:[#allocation6 + $0x4]]
    %v80 = vstv %s79
    %v81 = vmul.f32 %v37, %v80
    %v82 = vmul.f32 %v38, %v80
    %v83 = vmul.f32 %v81, 0.1
    %v84 = vmul.f32 %v82, 0.1
    %v85 = vmax.f32 %v81, %v83
    %v86 = vmax.f32 %v82, %v84
    %87 = vst [vmem:[#allocation7 + $0x40] sm:$0xff] %v85
    %88 = vst [vmem:[#allocation7 + $0x48] sm:$0xff] %v86
    %s89 = sld [smem:[#allocation6 + $0x5]]
    %v90 = vstv %s89
    %v91 = vmul.f32 %v37, %v90
    %v92 = vmul.f32 %v38, %v90
    %v93 = vmul.f32 %v91, 0.1
    %v94 = vmul.f32 %v92, 0.1
    %v95 = vmax.f32 %v91, %v93
    %v96 = vmax.f32 %v92, %v94
    %97 = vst [vmem:[#allocation7 + $0x50] sm:$0xff] %v95
    %98 = vst [vmem:[#allocation7 + $0x58] sm:$0xff] %v96
    %s99 = sld [smem:[#allocation6 + $0x6]]
    %v100 = vstv %s99
    %v101 = vmul.f32 %v37, %v100
    %v102 = vmul.f32 %v38, %v100
    %v103 = vmul.f32 %v101, 0.1
    %v104 = vmul.f32 %v102, 0.1
    %v105 = vmax.f32 %v101, %v103
    %v106 = vmax.f32 %v102, %v104
    %107 = vst [vmem:[#allocation7 + $0x60] sm:$0xff] %v105
    %108 = vst [vmem:[#allocation7 + $0x68] sm:$0xff] %v106
    %s109 = sld [smem:[#allocation6 + $0x7]]
    %v110 = vstv %s109
    %v111 = vmul.f32 %v37, %v110
    %v112 = vmul.f32 %v38, %v110
    %v113 = vmul.f32 %v111, 0.1
    %v114 = vmul.f32 %v112, 0.1
    %v115 = vmax.f32 %v111, %v113
    %v116 = vmax.f32 %v112, %v114
    %117 = vst [vmem:[#allocation7 + $0x70] sm:$0xff] %v115
    %118 = vst [vmem:[#allocation7 + $0x78] sm:$0xff] %v116
    // Predicated region
    $region18: #{tpu_custom_call.1} parent=1 // pred_check
      _
    $region19: #{tpu_custom_call.1} parent=1 // pred_check_branch
      %120 = sbr.rel (0) target = $region21
    $region20: #{tpu_custom_call.1} parent=1 // pred_region
      %s122 = ssub.s32 2048, 2048
      %123 = vsyncadd [#allocation4], %s122
      %s125 = sshll.u32 [#allocation7], 4
      %s126 = int_to_ptr.vmem [resolvable:$true] %s125
      %128 = dma.vmem_to_hbm [thread:$0]  %s126, 2048, %s2, [#allocation4]
    $region21: #{tpu_custom_call.1} parent=1 // pred_fallthru
      _
    // Predicated region
    $region22: #{tpu_custom_call.1} parent=1 // pred_check
      _
    $region23: #{tpu_custom_call.1} parent=1 // pred_check_branch
      %130 = sbr.rel (0) target = $region25
    $region24: #{tpu_custom_call.1} parent=1 // pred_region
      %131 = dma.done [#allocation4], 2048
    $region25: #{tpu_custom_call.1} parent=1 // pred_fallthru
      _
    %132 = vsyncpa [#allocation3], 1
    %133 = vsyncpa [#allocation4], 1
    %134 = vsyncpa [#allocation5], 1

</llo_original>
